<compile_context>
chip_gen: v7x
topology: tpu7x:2x2x1
jax: 0.10.0
libtpu: 0.0.40
codegen_flags: <defaults>
</compile_context>

<pallas_src>
import functools
import numpy as np
import jax
import jax.numpy as jnp
from jax import lax
from jax.experimental import pallas as pl
from jax.experimental.pallas import tpu as pltpu


# ----------------------------- Pallas kernels ------------------------------

def _head_kernel(ph_ref, w1_ref, b1_ref, w2_ref, b2_ref, o_ref, stack_ref,
                 *, rows, wq, cpad):
    """Fused 3x3/s2 conv (single K=9*Cpad matmul over a VMEM-assembled,
    stride-phase-shifted operand) + bias + ReLU + 1x1 classifier.

    Layout: channels/features/classes in sublanes, the flattened low-res
    spatial index (ho*Wq + wo, one garbage column per output row) in lanes.
    """
    # Load + widen each of the 4 stride-2 phase planes once (contiguous,
    # aligned loads), then assemble the (9*Cpad, rows) shifted operand with
    # nine aligned sublane-tile writes into the scratch.
    planes = [ph_ref[0, p, :, :].astype(jnp.float32) for p in range(4)]
    for k in range(9):
        i, j = k // 3, k % 3
        p = (i % 2) * 2 + (j % 2)             # which stride-2 phase plane
        start = (i // 2) * wq + (j // 2)      # static halo shift inside plane
        stack_ref[pl.ds(k * cpad, cpad), :] = planes[p][:, start:start + rows]

    stack = stack_ref[...].astype(jnp.bfloat16)                    # (9*Cpad, rows)
    featT = jnp.dot(w1_ref[...], stack,
                    preferred_element_type=jnp.float32)            # (c_feat, rows)
    featT = jnp.maximum(featT + b1_ref[...], 0.0)

    logitsT = jnp.dot(w2_ref[...], featT.astype(jnp.bfloat16),
                      preferred_element_type=jnp.float32)          # (ncls, rows)
    logitsT = logitsT + b2_ref[...]
    o_ref[0] = logitsT.astype(o_ref.dtype)


def _upsample_kernel(l_ref, awT_ref, ah_ref, o_ref):
    """True separable bilinear upsample of one (image, class) plane:
    width stage (Ho,Wq)@(Wq,W) then height stage (H,Ho)@(Ho,W).  W sits in
    the lane dimension; the intermediate stays f32 in VMEM."""
    t = jnp.dot(l_ref[0], awT_ref[...], preferred_element_type=jnp.float32)
    o_ref[0] = jnp.dot(ah_ref[...], t, preferred_element_type=jnp.float32)


# ------------------------------ pallas_call wrappers ------------------------

def head_pallas(phT, w1T, b1c, w2T, b2c, *, rows, wq, cpad):
    n = phT.shape[0]
    rpad = phT.shape[3]
    c_feat = w1T.shape[0]
    kdim = w1T.shape[1]                  # 9 * cpad
    ncls = w2T.shape[0]
    flops = n * (2 * rows * kdim * c_feat + 2 * rows * c_feat * ncls)
    bytes_acc = (phT.size * 2 + w1T.size * 2 + b1c.size * 4
                 + w2T.size * 2 + b2c.size * 4 + n * ncls * rows * 4)
    kern = functools.partial(_head_kernel, rows=rows, wq=wq, cpad=cpad)
    return pl.pallas_call(
        kern,
        grid=(n,),
        in_specs=[
            pl.BlockSpec((1, 4, cpad, rpad), lambda i: (i, 0, 0, 0)),
            pl.BlockSpec((c_feat, kdim), lambda i: (0, 0)),      # resident
            pl.BlockSpec((c_feat, 1), lambda i: (0, 0)),         # resident
            pl.BlockSpec((ncls, c_feat), lambda i: (0, 0)),      # resident
            pl.BlockSpec((ncls, 1), lambda i: (0, 0)),           # resident
        ],
        out_specs=pl.BlockSpec((1, ncls, rows), lambda i: (i, 0, 0)),
        out_shape=jax.ShapeDtypeStruct((n, ncls, rows), jnp.float32),
        scratch_shapes=[pltpu.VMEM((kdim, rows), jnp.float32)],
        compiler_params=pltpu.CompilerParams(
            dimension_semantics=("parallel",),
            # keep <=48MiB so the same tiling fits v7x; v5e/v6e could go higher
            vmem_limit_bytes=48 * 1024 * 1024),
        cost_estimate=pl.CostEstimate(flops=flops, transcendentals=0,
                                      bytes_accessed=bytes_acc),
    )(phT, w1T, b1c, w2T, b2c)


def upsample_pallas(lres, awT, ah):
    nplanes, ho, wq = lres.shape
    h = ah.shape[0]
    w = awT.shape[1]
    flops = nplanes * (2 * ho * wq * w + 2 * h * ho * w)
    bytes_acc = lres.size * 4 + awT.size * 4 + ah.size * 4 + nplanes * h * w * 4
    return pl.pallas_call(
        _upsample_kernel,
        grid=(nplanes,),
        in_specs=[
            pl.BlockSpec((1, ho, wq), lambda i: (i, 0, 0)),
            pl.BlockSpec((wq, w), lambda i: (0, 0)),             # resident
            pl.BlockSpec((h, ho), lambda i: (0, 0)),             # resident
        ],
        out_specs=pl.BlockSpec((1, h, w), lambda i: (i, 0, 0)),
        out_shape=jax.ShapeDtypeStruct((nplanes, h, w), jnp.float32),
        compiler_params=pltpu.CompilerParams(
            dimension_semantics=("parallel",),
            vmem_limit_bytes=48 * 1024 * 1024),
        cost_estimate=pl.CostEstimate(flops=flops, transcendentals=0,
                                      bytes_accessed=bytes_acc),
    )(lres, awT, ah)


# ------------------------------ JAX glue code -------------------------------

def bilinear_matrix(in_size, out_size):
    """Interpolation matrix matching F.interpolate(mode='bilinear',
    align_corners=False) along one axis (with PyTorch's src clamping)."""
    scale = in_size / out_size
    A = np.zeros((out_size, in_size), dtype=np.float32)
    for o in range(out_size):
        src = max((o + 0.5) * scale - 0.5, 0.0)
        i0 = min(int(np.floor(src)), in_size - 1)
        i1 = min(i0 + 1, in_size - 1)
        frac = src - i0
        A[o, i0] += 1.0 - frac
        A[o, i1] += frac
    return A


def simple_segmentation_forward(x, params):
    """x: (N, C, H, W) f32 NCHW.  Returns (N, num_classes, H, W) f32."""
    w1, b1, w2, b2 = params                      # torch-layout tensors
    N, C, H, W = x.shape
    c_feat = w1.shape[0]
    ncls = w2.shape[0]
    assert H % 2 == 0 and W % 2 == 0
    Ho, Wo = H // 2, W // 2                      # conv output (3x3, s2, pad1)
    Hq, Wq = Ho + 1, Wo + 1                      # stride-2 phase plane size
    rows = Ho * Wq                               # flat low-res rows (1 garbage col/row)
    cpad = ((C + 7) // 8) * 8                    # aligned sublane-tile writes in-kernel
    rpad = ((Hq * Wq + Wq + 2 + 127) // 128) * 128   # halo shift + lane-dense pad

    # ---- host layout prep: stride-2 phase decomposition of padded NCHW ----
    # TODO(synk): at production sizes fold this into the head kernel's own DMA
    #   (row-tiled index_map over a padded NCHW buffer) instead of an HBM pass.
    xp = jnp.pad(x, ((0, 0), (0, 0), (1, 1), (1, 1)))
    phT = xp.reshape(N, C, Hq, 2, Wq, 2).transpose(0, 3, 5, 1, 2, 4)
    phT = phT.reshape(N, 4, C, Hq * Wq)
    phT = jnp.pad(phT, ((0, 0), (0, 0), (0, cpad - C), (0, rpad - Hq * Wq)))
    phT = phT.astype(jnp.bfloat16)

    # weights in class-major matmul layout, bf16, channel dim padded to cpad
    w1p = jnp.pad(w1, ((0, 0), (0, cpad - C), (0, 0), (0, 0)))
    w1T = jnp.transpose(w1p, (0, 2, 3, 1)).reshape(c_feat, 9 * cpad)
    w1T = w1T.astype(jnp.bfloat16)
    b1c = b1.reshape(c_feat, 1).astype(jnp.float32)
    w2T = w2.reshape(ncls, c_feat).astype(jnp.bfloat16)
    b2c = b2.reshape(ncls, 1).astype(jnp.float32)

    # ---- kernel 1: conv + ReLU + classifier -> class-major low-res logits ----
    logits = head_pallas(phT, w1T, b1c, w2T, b2c, rows=rows, wq=Wq, cpad=cpad)
    lres = logits.reshape(N * ncls, Ho, Wq)      # row-major compatible (free)

    # ---- kernel 2: true separable bilinear upsample (small matrices only) ----
    A_h = bilinear_matrix(Ho, H)                 # (H, Ho)
    A_w = bilinear_matrix(Wo, W)                 # (W, Wo)
    awT = np.zeros((Wq, W), np.float32)
    awT[:Wo, :] = A_w.T                          # zero row kills the garbage column
    up = upsample_pallas(lres, jnp.asarray(awT), jnp.asarray(A_h))
    return up.reshape(N, ncls, H, W)             # NCHW, like PyTorch


def reference_forward(x, params):
    """Pure-JAX reference (conv + relu + 1x1 conv + bilinear via matrices)."""
    w1, b1, w2, b2 = params
    N, C, H, W = x.shape
    f = lax.conv_general_dilated(x, w1, (2, 2), ((1, 1), (1, 1)),
                                 dimension_numbers=('NCHW', 'OIHW', 'NCHW'))
    f = jax.nn.relu(f + b1.reshape(1, -1, 1, 1))
    logits = lax.conv_general_dilated(f, w2, (1, 1), ((0, 0), (0, 0)),
                                      dimension_numbers=('NCHW', 'OIHW', 'NCHW'))
    logits = logits + b2.reshape(1, -1, 1, 1)
    Ho, Wo = logits.shape[-2:]
    A_h = jnp.asarray(bilinear_matrix(Ho, H))
    A_w = jnp.asarray(bilinear_matrix(Wo, W))
    return jnp.einsum('ho,wp,ncop->nchw', A_h, A_w, logits)


def init_params(key, c_in, c_feat, num_classes):
    k1, k2, k3, k4 = jax.random.split(key, 4)
    w1 = 0.1 * jax.random.normal(k1, (c_feat, c_in, 3, 3), jnp.float32)
    b1 = 0.1 * jax.random.normal(k2, (c_feat,), jnp.float32)
    w2 = 0.1 * jax.random.normal(k3, (num_classes, c_feat, 1, 1), jnp.float32)
    b2 = 0.1 * jax.random.normal(k4, (num_classes,), jnp.float32)
    return (w1, b1, w2, b2)


if __name__ == "__main__":
    key = jax.random.PRNGKey(0)
    kx, kp = jax.random.split(key)

    N, C, H, W = 2, 4, 16, 16
    C_FEAT, NUM_CLASSES = 8, 6

    x = jax.random.normal(kx, (N, C, H, W), jnp.float32)
    params = init_params(kp, C, C_FEAT, NUM_CLASSES)

    fwd = jax.jit(simple_segmentation_forward)
    out = jax.block_until_ready(fwd(x, params))

    assert out.shape == (N, NUM_CLASSES, H, W), out.shape
    assert out.dtype == jnp.float32
    assert bool(jnp.all(jnp.isfinite(out)))

    ref = reference_forward(x, params)
    max_err = float(jnp.max(jnp.abs(out - ref)))
    assert max_err < 5e-2, f"max abs error vs reference: {max_err}"

    print("KERNEL_OK")
</pallas_src>

<mosaic_0001>
module attributes {stable_mosaic.version = 11 : i64} {
  func.func @_head_kernel(%arg0: i32, %arg1: memref<1x4x8x128xbf16, #tpu.memory_space<vmem>>, %arg2: memref<8x72xbf16, #tpu.memory_space<vmem>>, %arg3: memref<8x1xf32, #tpu.memory_space<vmem>>, %arg4: memref<6x8xbf16, #tpu.memory_space<vmem>>, %arg5: memref<6x1xf32, #tpu.memory_space<vmem>>, %arg6: memref<1x6x72xf32, #tpu.memory_space<vmem>>, %arg7: memref<72x72xf32, #tpu.memory_space<vmem>>) attributes {dimension_semantics = [#tpu.dimension_semantics<parallel>], iteration_bounds = array<i64: 2>, scalar_prefetch = 0 : i64, scratch_operands = 1 : i64, tpu.core_type = #tpu.core_type<tc>, window_params = [{transform_indices = @transform_0, window_bounds = array<i64: 1, 4, 8, 128>}, {pipeline_mode = #tpu.pipeline_mode<synchronous>, transform_indices = @transform_1, window_bounds = array<i64: 8, 72>}, {pipeline_mode = #tpu.pipeline_mode<synchronous>, transform_indices = @transform_2, window_bounds = array<i64: 8, 1>}, {pipeline_mode = #tpu.pipeline_mode<synchronous>, transform_indices = @transform_3, window_bounds = array<i64: 6, 8>}, {pipeline_mode = #tpu.pipeline_mode<synchronous>, transform_indices = @transform_4, window_bounds = array<i64: 6, 1>}, {transform_indices = @transform_5, window_bounds = array<i64: 1, 6, 72>}]} {
    %c0 = arith.constant 0 : index
    %c0_0 = arith.constant 0 : index
    %c0_1 = arith.constant 0 : index
    %c0_2 = arith.constant 0 : index
    %0 = vector.load %arg1[%c0, %c0_0, %c0_1, %c0_2] : memref<1x4x8x128xbf16, #tpu.memory_space<vmem>>, vector<1x1x8x128xbf16>
    %1 = vector.shape_cast %0 : vector<1x1x8x128xbf16> to vector<8x128xbf16>
    %2 = arith.extf %1 : vector<8x128xbf16> to vector<8x128xf32>
    %c0_3 = arith.constant 0 : index
    %c1 = arith.constant 1 : index
    %c0_4 = arith.constant 0 : index
    %c0_5 = arith.constant 0 : index
    %3 = vector.load %arg1[%c0_3, %c1, %c0_4, %c0_5] : memref<1x4x8x128xbf16, #tpu.memory_space<vmem>>, vector<1x1x8x128xbf16>
    %4 = vector.shape_cast %3 : vector<1x1x8x128xbf16> to vector<8x128xbf16>
    %5 = arith.extf %4 : vector<8x128xbf16> to vector<8x128xf32>
    %c0_6 = arith.constant 0 : index
    %c2 = arith.constant 2 : index
    %c0_7 = arith.constant 0 : index
    %c0_8 = arith.constant 0 : index
    %6 = vector.load %arg1[%c0_6, %c2, %c0_7, %c0_8] : memref<1x4x8x128xbf16, #tpu.memory_space<vmem>>, vector<1x1x8x128xbf16>
    %7 = vector.shape_cast %6 : vector<1x1x8x128xbf16> to vector<8x128xbf16>
    %8 = arith.extf %7 : vector<8x128xbf16> to vector<8x128xf32>
    %c0_9 = arith.constant 0 : index
    %c3 = arith.constant 3 : index
    %c0_10 = arith.constant 0 : index
    %c0_11 = arith.constant 0 : index
    %9 = vector.load %arg1[%c0_9, %c3, %c0_10, %c0_11] : memref<1x4x8x128xbf16, #tpu.memory_space<vmem>>, vector<1x1x8x128xbf16>
    %10 = vector.shape_cast %9 : vector<1x1x8x128xbf16> to vector<8x128xbf16>
    %11 = arith.extf %10 : vector<8x128xbf16> to vector<8x128xf32>
    %12 = vector.extract_strided_slice %2 {offsets = [0, 0], sizes = [8, 72], strides = [1, 1]} : vector<8x128xf32> to vector<8x72xf32>
    %c0_12 = arith.constant 0 : index
    %c0_13 = arith.constant 0 : index
    %13 = vector.load %arg7[%c0_12, %c0_13] : memref<72x72xf32, #tpu.memory_space<vmem>>, vector<8x72xf32>
    tpu.vector_store %arg7[%c0_12, %c0_13], %12 {strides = array<i32>} : memref<72x72xf32, #tpu.memory_space<vmem>>, vector<8x72xf32>,
    %14 = vector.extract_strided_slice %5 {offsets = [0, 0], sizes = [8, 72], strides = [1, 1]} : vector<8x128xf32> to vector<8x72xf32>
    %c8 = arith.constant 8 : index
    %c0_14 = arith.constant 0 : index
    %15 = vector.load %arg7[%c8, %c0_14] : memref<72x72xf32, #tpu.memory_space<vmem>>, vector<8x72xf32>
    tpu.vector_store %arg7[%c8, %c0_14], %14 {strides = array<i32>} : memref<72x72xf32, #tpu.memory_space<vmem>>, vector<8x72xf32>,
    %16 = vector.extract_strided_slice %2 {offsets = [0, 1], sizes = [8, 72], strides = [1, 1]} : vector<8x128xf32> to vector<8x72xf32>
    %c16 = arith.constant 16 : index
    %c0_15 = arith.constant 0 : index
    %17 = vector.load %arg7[%c16, %c0_15] : memref<72x72xf32, #tpu.memory_space<vmem>>, vector<8x72xf32>
    tpu.vector_store %arg7[%c16, %c0_15], %16 {strides = array<i32>} : memref<72x72xf32, #tpu.memory_space<vmem>>, vector<8x72xf32>,
    %18 = vector.extract_strided_slice %8 {offsets = [0, 0], sizes = [8, 72], strides = [1, 1]} : vector<8x128xf32> to vector<8x72xf32>
    %c24 = arith.constant 24 : index
    %c0_16 = arith.constant 0 : index
    %19 = vector.load %arg7[%c24, %c0_16] : memref<72x72xf32, #tpu.memory_space<vmem>>, vector<8x72xf32>
    tpu.vector_store %arg7[%c24, %c0_16], %18 {strides = array<i32>} : memref<72x72xf32, #tpu.memory_space<vmem>>, vector<8x72xf32>,
    %20 = vector.extract_strided_slice %11 {offsets = [0, 0], sizes = [8, 72], strides = [1, 1]} : vector<8x128xf32> to vector<8x72xf32>
    %c32 = arith.constant 32 : index
    %c0_17 = arith.constant 0 : index
    %21 = vector.load %arg7[%c32, %c0_17] : memref<72x72xf32, #tpu.memory_space<vmem>>, vector<8x72xf32>
    tpu.vector_store %arg7[%c32, %c0_17], %20 {strides = array<i32>} : memref<72x72xf32, #tpu.memory_space<vmem>>, vector<8x72xf32>,
    %22 = vector.extract_strided_slice %8 {offsets = [0, 1], sizes = [8, 72], strides = [1, 1]} : vector<8x128xf32> to vector<8x72xf32>
    %c40 = arith.constant 40 : index
    %c0_18 = arith.constant 0 : index
    %23 = vector.load %arg7[%c40, %c0_18] : memref<72x72xf32, #tpu.memory_space<vmem>>, vector<8x72xf32>
    tpu.vector_store %arg7[%c40, %c0_18], %22 {strides = array<i32>} : memref<72x72xf32, #tpu.memory_space<vmem>>, vector<8x72xf32>,
    %24 = vector.extract_strided_slice %2 {offsets = [0, 9], sizes = [8, 72], strides = [1, 1]} : vector<8x128xf32> to vector<8x72xf32>
    %c48 = arith.constant 48 : index
    %c0_19 = arith.constant 0 : index
    %25 = vector.load %arg7[%c48, %c0_19] : memref<72x72xf32, #tpu.memory_space<vmem>>, vector<8x72xf32>
    tpu.vector_store %arg7[%c48, %c0_19], %24 {strides = array<i32>} : memref<72x72xf32, #tpu.memory_space<vmem>>, vector<8x72xf32>,
    %26 = vector.extract_strided_slice %5 {offsets = [0, 9], sizes = [8, 72], strides = [1, 1]} : vector<8x128xf32> to vector<8x72xf32>
    %c56 = arith.constant 56 : index
    %c0_20 = arith.constant 0 : index
    %27 = vector.load %arg7[%c56, %c0_20] : memref<72x72xf32, #tpu.memory_space<vmem>>, vector<8x72xf32>
    tpu.vector_store %arg7[%c56, %c0_20], %26 {strides = array<i32>} : memref<72x72xf32, #tpu.memory_space<vmem>>, vector<8x72xf32>,
    %28 = vector.extract_strided_slice %2 {offsets = [0, 10], sizes = [8, 72], strides = [1, 1]} : vector<8x128xf32> to vector<8x72xf32>
    %c64 = arith.constant 64 : index
    %c0_21 = arith.constant 0 : index
    %29 = vector.load %arg7[%c64, %c0_21] : memref<72x72xf32, #tpu.memory_space<vmem>>, vector<8x72xf32>
    tpu.vector_store %arg7[%c64, %c0_21], %28 {strides = array<i32>} : memref<72x72xf32, #tpu.memory_space<vmem>>, vector<8x72xf32>,
    %c0_22 = arith.constant 0 : index
    %c0_23 = arith.constant 0 : index
    %30 = vector.load %arg7[%c0_22, %c0_23] : memref<72x72xf32, #tpu.memory_space<vmem>>, vector<72x72xf32>
    %31 = arith.truncf %30 : vector<72x72xf32> to vector<72x72xbf16>
    %c0_24 = arith.constant 0 : index
    %c0_25 = arith.constant 0 : index
    %32 = vector.load %arg2[%c0_24, %c0_25] : memref<8x72xbf16, #tpu.memory_space<vmem>>, vector<8x72xbf16>
    %cst = arith.constant dense<0.000000e+00> : vector<8x72xf32>
    %33 = tpu.matmul %32, %31, %cst {dimension_numbers = #tpu.dot_dimension_numbers<[1], [0], [0], [1], [0, 0, 1, 1], [], []>} : vector<8x72xbf16>, vector<72x72xbf16>, vector<8x72xf32> -> vector<8x72xf32>
    %c0_26 = arith.constant 0 : index
    %c0_27 = arith.constant 0 : index
    %34 = vector.load %arg3[%c0_26, %c0_27] : memref<8x1xf32, #tpu.memory_space<vmem>>, vector<8x1xf32>
    %35 = vector.broadcast %34 : vector<8x1xf32> to vector<8x72xf32>
    %36 = arith.addf %33, %35 : vector<8x72xf32>
    %cst_28 = arith.constant 0.000000e+00 : f32
    %37 = vector.broadcast %cst_28 : f32 to vector<8x72xf32>
    %38 = arith.maximumf %36, %37 : vector<8x72xf32>
    %c0_29 = arith.constant 0 : index
    %c0_30 = arith.constant 0 : index
    %39 = vector.load %arg4[%c0_29, %c0_30] : memref<6x8xbf16, #tpu.memory_space<vmem>>, vector<6x8xbf16>
    %40 = arith.truncf %38 : vector<8x72xf32> to vector<8x72xbf16>
    %cst_31 = arith.constant dense<0.000000e+00> : vector<6x72xf32>
    %41 = tpu.matmul %39, %40, %cst_31 {dimension_numbers = #tpu.dot_dimension_numbers<[1], [0], [0], [1], [0, 0, 1, 1], [], []>} : vector<6x8xbf16>, vector<8x72xbf16>, vector<6x72xf32> -> vector<6x72xf32>
    %c0_32 = arith.constant 0 : index
    %c0_33 = arith.constant 0 : index
    %42 = vector.load %arg5[%c0_32, %c0_33] : memref<6x1xf32, #tpu.memory_space<vmem>>, vector<6x1xf32>
    %43 = vector.broadcast %42 : vector<6x1xf32> to vector<6x72xf32>
    %44 = arith.addf %41, %43 : vector<6x72xf32>
    %c0_34 = arith.constant 0 : index
    %c0_35 = arith.constant 0 : index
    %c0_36 = arith.constant 0 : index
    %45 = vector.load %arg6[%c0_34, %c0_35, %c0_36] : memref<1x6x72xf32, #tpu.memory_space<vmem>>, vector<1x6x72xf32>
    %46 = vector.shape_cast %45 : vector<1x6x72xf32> to vector<6x72xf32>
    %47 = vector.shape_cast %44 : vector<6x72xf32> to vector<1x6x72xf32>
    tpu.vector_store %arg6[%c0_34, %c0_35, %c0_36], %47 {strides = array<i32>} : memref<1x6x72xf32, #tpu.memory_space<vmem>>, vector<1x6x72xf32>,
    return
  }
  func.func @transform_0(%arg0: i32) -> (i32, i32, i32, i32) {
    %c0_i32 = arith.constant 0 : i32
    %c0_i32_0 = arith.constant 0 : i32
    %c0_i32_1 = arith.constant 0 : i32
    %c0_i32_2 = arith.constant 0 : i32
    return %arg0, %c0_i32, %c0_i32_0, %c0_i32_1 : i32, i32, i32, i32
  }
  func.func @transform_1(%arg0: i32) -> (i32, i32) {
    %c0_i32 = arith.constant 0 : i32
    %c0_i32_0 = arith.constant 0 : i32
    %c0_i32_1 = arith.constant 0 : i32
    return %c0_i32, %c0_i32_0 : i32, i32
  }
  func.func @transform_2(%arg0: i32) -> (i32, i32) {
    %c0_i32 = arith.constant 0 : i32
    %c0_i32_0 = arith.constant 0 : i32
    %c0_i32_1 = arith.constant 0 : i32
    return %c0_i32, %c0_i32_0 : i32, i32
  }
  func.func @transform_3(%arg0: i32) -> (i32, i32) {
    %c0_i32 = arith.constant 0 : i32
    %c0_i32_0 = arith.constant 0 : i32
    %c0_i32_1 = arith.constant 0 : i32
    return %c0_i32, %c0_i32_0 : i32, i32
  }
  func.func @transform_4(%arg0: i32) -> (i32, i32) {
    %c0_i32 = arith.constant 0 : i32
    %c0_i32_0 = arith.constant 0 : i32
    %c0_i32_1 = arith.constant 0 : i32
    return %c0_i32, %c0_i32_0 : i32, i32
  }
  func.func @transform_5(%arg0: i32) -> (i32, i32, i32) {
    %c0_i32 = arith.constant 0 : i32
    %c0_i32_0 = arith.constant 0 : i32
    %c0_i32_1 = arith.constant 0 : i32
    return %arg0, %c0_i32, %c0_i32_0 : i32, i32, i32
  }
}

module attributes {stable_mosaic.version = 11 : i64} {
  func.func @_upsample_kernel(%arg0: i32, %arg1: memref<1x8x9xf32, #tpu.memory_space<vmem>>, %arg2: memref<9x16xf32, #tpu.memory_space<vmem>>, %arg3: memref<16x8xf32, #tpu.memory_space<vmem>>, %arg4: memref<1x16x16xf32, #tpu.memory_space<vmem>>) attributes {dimension_semantics = [#tpu.dimension_semantics<parallel>], iteration_bounds = array<i64: 12>, scalar_prefetch = 0 : i64, scratch_operands = 0 : i64, tpu.core_type = #tpu.core_type<tc>, window_params = [{transform_indices = @transform_0, window_bounds = array<i64: 1, 8, 9>}, {pipeline_mode = #tpu.pipeline_mode<synchronous>, transform_indices = @transform_1, window_bounds = array<i64: 9, 16>}, {pipeline_mode = #tpu.pipeline_mode<synchronous>, transform_indices = @transform_2, window_bounds = array<i64: 16, 8>}, {transform_indices = @transform_3, window_bounds = array<i64: 1, 16, 16>}]} {
    %c0 = arith.constant 0 : index
    %c0_0 = arith.constant 0 : index
    %c0_1 = arith.constant 0 : index
    %0 = vector.load %arg1[%c0, %c0_0, %c0_1] : memref<1x8x9xf32, #tpu.memory_space<vmem>>, vector<1x8x9xf32>
    %1 = vector.shape_cast %0 : vector<1x8x9xf32> to vector<8x9xf32>
    %c0_2 = arith.constant 0 : index
    %c0_3 = arith.constant 0 : index
    %2 = vector.load %arg2[%c0_2, %c0_3] : memref<9x16xf32, #tpu.memory_space<vmem>>, vector<9x16xf32>
    %cst = arith.constant dense<0.000000e+00> : vector<8x16xf32>
    %3 = tpu.matmul %1, %2, %cst {dimension_numbers = #tpu.dot_dimension_numbers<[1], [0], [0], [1], [0, 0, 1, 1], [], []>} : vector<8x9xf32>, vector<9x16xf32>, vector<8x16xf32> -> vector<8x16xf32>
    %c0_4 = arith.constant 0 : index
    %c0_5 = arith.constant 0 : index
    %4 = vector.load %arg3[%c0_4, %c0_5] : memref<16x8xf32, #tpu.memory_space<vmem>>, vector<16x8xf32>
    %cst_6 = arith.constant dense<0.000000e+00> : vector<16x16xf32>
    %5 = tpu.matmul %4, %3, %cst_6 {dimension_numbers = #tpu.dot_dimension_numbers<[1], [0], [0], [1], [0, 0, 1, 1], [], []>} : vector<16x8xf32>, vector<8x16xf32>, vector<16x16xf32> -> vector<16x16xf32>
    %c0_7 = arith.constant 0 : index
    %c0_8 = arith.constant 0 : index
    %c0_9 = arith.constant 0 : index
    %6 = vector.load %arg4[%c0_7, %c0_8, %c0_9] : memref<1x16x16xf32, #tpu.memory_space<vmem>>, vector<1x16x16xf32>
    %7 = vector.shape_cast %6 : vector<1x16x16xf32> to vector<16x16xf32>
    %8 = vector.shape_cast %5 : vector<16x16xf32> to vector<1x16x16xf32>
    tpu.vector_store %arg4[%c0_7, %c0_8, %c0_9], %8 {strides = array<i32>} : memref<1x16x16xf32, #tpu.memory_space<vmem>>, vector<1x16x16xf32>,
    return
  }
  func.func @transform_0(%arg0: i32) -> (i32, i32, i32) {
    %c0_i32 = arith.constant 0 : i32
    %c0_i32_0 = arith.constant 0 : i32
    %c0_i32_1 = arith.constant 0 : i32
    return %arg0, %c0_i32, %c0_i32_0 : i32, i32, i32
  }
  func.func @transform_1(%arg0: i32) -> (i32, i32) {
    %c0_i32 = arith.constant 0 : i32
    %c0_i32_0 = arith.constant 0 : i32
    %c0_i32_1 = arith.constant 0 : i32
    return %c0_i32, %c0_i32_0 : i32, i32
  }
  func.func @transform_2(%arg0: i32) -> (i32, i32) {
    %c0_i32 = arith.constant 0 : i32
    %c0_i32_0 = arith.constant 0 : i32
    %c0_i32_1 = arith.constant 0 : i32
    return %c0_i32, %c0_i32_0 : i32, i32
  }
  func.func @transform_3(%arg0: i32) -> (i32, i32, i32) {
    %c0_i32 = arith.constant 0 : i32
    %c0_i32_0 = arith.constant 0 : i32
    %c0_i32_1 = arith.constant 0 : i32
    return %arg0, %c0_i32, %c0_i32_0 : i32, i32, i32
  }
}

</mosaic_0001>

<llo_original>
// kernel: simple_segmentation_forward.3
$region0: #{simple_segmentation_forward.3}
  #allocation0 [shape = 'u32[]', space=smem, size = 0x4, offset = 0x4, fixed_abs, tag = 'smem constant byte address 0x4 - core index']
  #allocation1 [shape = 'u32[144,128]{1,0:T(1,128)}', space=vmem, size = 0x12000, scoped, tag = 'internal scratch']
  %s0 = inlined_call_operand.vmem [shape: f32[12,8,9], index: 0, kind: input, shape index: {}]
  %s1 = inlined_call_operand.vmem [shape: f32[9,16], index: 1, kind: input, shape index: {}]
  %s2 = inlined_call_operand.vmem [shape: f32[16,8], index: 2, kind: input, shape index: {}]
  %s3 = inlined_call_operand.hbm [shape: f32[12,16,16], index: 3, kind: output, shape index: {}]
  %s4 = sld [smem:[#allocation0]]
  $region45: #{simple_segmentation_forward.3} parent=0
    _
  %s6 = ssub.s32 1, %s4
  %s7 = scalar_select 0, %s6, %s4
  $region1: #{simple_segmentation_forward.3} parent=0
    #allocation2 [shape = 'u8[16384]{0}', space=vmem, size = 0x4000, scoped, tag = 'output window, operand 0']
    #allocation3 [shape = 's32[2]{0}', space=sflag, size = 0x8, scoped, tag = 'scoped memory for simple_segmentation_forward.3']
    %8 = vsyncpa [#allocation3], 0
    %s9 = scalar_lea.sflag [#allocation3], 1
    %10 = vsyncpa %s9, 0
    loop: start=0, step=1, limit=14
    $region2: #{simple_segmentation_forward.3} parent=1 // loop_pre_header
      _
    $region3: #{simple_segmentation_forward.3} parent=1 // loop_header
      %s12 = sphi 0, %s16
      %p13 = scmp.ge.s32.totalorder %s12, 14
      %s22 = sphi 0, %s24
      %s25 = sphi 0, %s22
      %s26 = sphi 0, %s25
      %s42 = sphi 0, %s26
      %s46 = sphi 0, %s46
      %s48 = sphi 0, %s46
      %s49 = sphi 0, %s48
      %s63 = sphi 0, %s49
      %s67 = sphi 0, %s67
      %s69 = sphi 0, %s67
      %s70 = sphi 0, %s69
      %s84 = sphi 0, %s70
      %s90 = sphi 0, %s92
      %s93 = sphi 0, %s90
      %s94 = sphi 0, %s93
      %s110 = sphi 0, %s94
    $region4: #{simple_segmentation_forward.3} parent=1 // loop_header_branch
      %15 = sbr.rel (%p13) target = $region8
    $region5: #{simple_segmentation_forward.3} parent=1 // loop_body
      %s17 = ssub.s32 %s12, 1
      %s18 = ssub.s32 %s12, 2
      %s19 = sadd.s32 %s12, 1
      %s20 = ssub.s32 %s12, %s19
      %p21 = scmp.eq.s32.totalorder %s20, 0
      %s23 = sadd.s32 %s22, 1
      %s24 = scalar_select %p21, %s22, %s23
      %p27 = pneg %p21
      %p28 = scmp.eq.s32.totalorder %s12, 11
      %p29 = por %p27, %p28
      %p30 = scmp.ne.s32.totalorder %s22, %s25
      %p31 = scmp.eq.s32.totalorder %s12, 0
      %p32 = por %p30, %p31
      %p33 = scmp.ne.s32.totalorder %s22, %s25
      %p34 = scmp.eq.s32.totalorder %s17, 11
      %p35 = por %p33, %p34
      %p36 = scmp.ne.s32.totalorder %s25, %s26
      %p37 = scmp.eq.s32.totalorder %s17, 0
      %p38 = por %p36, %p37
      %p39 = scmp.ne.s32.totalorder %s25, %s26
      %p40 = scmp.eq.s32.totalorder %s18, 11
      %p41 = por %p39, %p40
      %p43 = scmp.ne.s32.totalorder %s26, %s42
      %p44 = scmp.eq.s32.totalorder %s18, 0
      %p45 = por %p43, %p44
      %s47 = sadd.s32 %s46, 1
      %p50 = scmp.eq.s32.totalorder %s12, 11
      %p51 = scmp.ne.s32.totalorder %s46, %s48
      %p52 = scmp.eq.s32.totalorder %s12, 0
      %p53 = por %p51, %p52
      %p54 = scmp.ne.s32.totalorder %s46, %s48
      %p55 = scmp.eq.s32.totalorder %s17, 11
      %p56 = por %p54, %p55
      %p57 = scmp.ne.s32.totalorder %s48, %s49
      %p58 = scmp.eq.s32.totalorder %s17, 0
      %p59 = por %p57, %p58
      %p60 = scmp.ne.s32.totalorder %s48, %s49
      %p61 = scmp.eq.s32.totalorder %s18, 11
      %p62 = por %p60, %p61
      %p64 = scmp.ne.s32.totalorder %s49, %s63
      %p65 = scmp.eq.s32.totalorder %s18, 0
      %p66 = por %p64, %p65
      %s68 = sadd.s32 %s67, 1
      %p71 = scmp.eq.s32.totalorder %s12, 11
      %p72 = scmp.ne.s32.totalorder %s67, %s69
      %p73 = scmp.eq.s32.totalorder %s12, 0
      %p74 = por %p72, %p73
      %p75 = scmp.ne.s32.totalorder %s67, %s69
      %p76 = scmp.eq.s32.totalorder %s17, 11
      %p77 = por %p75, %p76
      %p78 = scmp.ne.s32.totalorder %s69, %s70
      %p79 = scmp.eq.s32.totalorder %s17, 0
      %p80 = por %p78, %p79
      %p81 = scmp.ne.s32.totalorder %s69, %s70
      %p82 = scmp.eq.s32.totalorder %s18, 11
      %p83 = por %p81, %p82
      %p85 = scmp.ne.s32.totalorder %s70, %s84
      %p86 = scmp.eq.s32.totalorder %s18, 0
      %p87 = por %p85, %p86
      %s88 = ssub.s32 %s12, %s19
      %p89 = scmp.eq.s32.totalorder %s88, 0
      %s91 = sadd.s32 %s90, 1
      %s92 = scalar_select %p89, %s90, %s91
      %p95 = pneg %p89
      %p96 = scmp.eq.s32.totalorder %s12, 11
      %p97 = por %p95, %p96
      %p98 = scmp.ne.s32.totalorder %s90, %s93
      %p99 = scmp.eq.s32.totalorder %s12, 0
      %p100 = por %p98, %p99
      %p101 = scmp.ne.s32.totalorder %s90, %s93
      %p102 = scmp.eq.s32.totalorder %s17, 11
      %p103 = por %p101, %p102
      %p104 = scmp.ne.s32.totalorder %s93, %s94
      %p105 = scmp.eq.s32.totalorder %s17, 0
      %p106 = por %p104, %p105
      %p107 = scmp.ne.s32.totalorder %s93, %s94
      %p108 = scmp.eq.s32.totalorder %s18, 11
      %p109 = por %p107, %p108
      %p111 = scmp.ne.s32.totalorder %s94, %s110
      %p112 = scmp.eq.s32.totalorder %s18, 0
      %p113 = por %p111, %p112
      %p114 = scmp.le.s32.totalorder 1, %s12
      %p115 = scmp.lt.s32.totalorder %s12, 13
      %p116 = pnand %p114, %p115
      %p117 = pneg %p116
      // Predicated region
      $region9: #{simple_segmentation_forward.3} parent=5 // pred_check
        _
      $region10: #{simple_segmentation_forward.3} parent=5 // pred_check_branch
        %119 = sbr.rel (%p116) target = $region12
      $region11: #{simple_segmentation_forward.3} parent=5 // pred_region
        %s120 = ssub.s32 %s12, 1
        // Predicated region
        $region13: #{simple_segmentation_forward.3} parent=11 // pred_check
          %p121 = pneg %p59
        $region14: #{simple_segmentation_forward.3} parent=11 // pred_check_branch
          %123 = sbr.rel (%p121) target = $region16
        $region15: #{simple_segmentation_forward.3} parent=11 // pred_region
          _
        $region16: #{simple_segmentation_forward.3} parent=11 // pred_fallthru
          _
        // Predicated region
        $region17: #{simple_segmentation_forward.3} parent=11 // pred_check
          %p124 = pneg %p80
        $region18: #{simple_segmentation_forward.3} parent=11 // pred_check_branch
          %126 = sbr.rel (%p124) target = $region20
        $region19: #{simple_segmentation_forward.3} parent=11 // pred_region
          _
        $region20: #{simple_segmentation_forward.3} parent=11 // pred_fallthru
          _
      $region12: #{simple_segmentation_forward.3} parent=5 // pred_fallthru
        _
      %p127 = scmp.lt.s32.totalorder %s12, 12
      // Predicated region
      $region21: #{simple_segmentation_forward.3} parent=5 // pred_check
        %p128 = pneg %p127
      $region22: #{simple_segmentation_forward.3} parent=5 // pred_check_branch
        %130 = sbr.rel (%p128) target = $region24
      $region23: #{simple_segmentation_forward.3} parent=5 // pred_region
        // Predicated region
        $region25: #{simple_segmentation_forward.3} parent=23 // pred_check
          %p131 = pneg %p32
        $region26: #{simple_segmentation_forward.3} parent=23 // pred_check_branch
          %133 = sbr.rel (%p131) target = $region28
        $region27: #{simple_segmentation_forward.3} parent=23 // pred_region
          %p134 = scmp.lt.s32.totalorder %s12, 11
          %s135 = scalar_select %p134, %s12, 11
          %s136 = smul.addr %s135, 8
          %s137 = scalar_lea.vmem %s0, %s136
        $region28: #{simple_segmentation_forward.3} parent=23 // pred_fallthru
          _
      $region24: #{simple_segmentation_forward.3} parent=5 // pred_fallthru
        _
      %p138 = scmp.le.s32.totalorder 1, %s12
      %p139 = scmp.lt.s32.totalorder %s12, 13
      %p140 = pnand %p138, %p139
      %p141 = pneg %p140
      // Predicated region
      $region29: #{simple_segmentation_forward.3} parent=5 // pred_check
        _
      $region30: #{simple_segmentation_forward.3} parent=5 // pred_check_branch
        %143 = sbr.rel (%p140) target = $region32
      $region31: #{simple_segmentation_forward.3} parent=5 // pred_region
        %s144 = ssub.s32 %s12, 1
        %p145 = scmp.lt.s32.totalorder %s17, 11
        %s146 = scalar_select %p145, %s17, 11
        %s147 = smul.addr %s146, 8
        %s148 = scalar_lea.vmem %s0, %s147
        %p149 = pneg %p38
        %p150 = pneg %p35
        %p151 = pneg %p59
        %p152 = pneg %p56
        %p153 = pneg %p80
        %p154 = pneg %p77
        %p155 = pneg %p106
        %p156 = pneg %p103
        %s157 = sand.u32 %s93, 1
        %s158 = scalar_lea.sflag [#allocation3], %s157
        %s159 = sand.u32 %s93, 1
        %s160 = smul.addr %s159, 16
        %s161 = scalar_lea.vmem [#allocation2], %s160
        %p162 = scmp.lt.s32.totalorder %s17, 11
        %s163 = scalar_select %p162, %s17, 11
        %s164 = smul.addr %s163, 8
        %s165 = scalar_lea.vmem %s0, %s164
        %v166 = vld [vmem:[%s165] sm:$0xff]
        %v167 = vld [vmem:[%s1] sm:$0xff]
        %v168 = vld [vmem:[%s1 + $0x8] sm:$0x1]
        %vm169 = vcmask 72704
        %v171 = vsel %vm169, %v166, 0
        %vm173 = vcmask 1040384
        %v175 = vsel %vm173, %v168, 0
        %177 = vmatprep.subr.mxu0 0.0
        %178 = vmatpush1.msra.mxu0 %v167
        %179 = vmatprep.subr.mxu0 0.0
        %180 = vmatpush1.msra.mxu0 %v175
        %181 = vmatprep.subr.mxu0 0.0
        %182 = vmatpush1.msra.mxu0 0.0
        %183 = vmatprep.subr.mxu0 0.0
        %184 = vmatpush1.msra.mxu0 0.0
        %185 = vmatprep.subr.mxu0 0.0
        %186 = vmatpush1.msra.mxu0 0.0
        %187 = vmatprep.subr.mxu0 0.0
        %188 = vmatpush1.msra.mxu0 0.0
        %189 = vmatprep.subr.mxu0 0.0
        %190 = vmatpush1.msra.mxu0 0.0
        %191 = vmatprep.subr.mxu0 0.0
        %192 = vmatpush1.msra.mxu0 0.0
        %193 = vmatprep.subr.mxu0 0.0
        %194 = vmatpush1.msra.mxu0 0.0
        %195 = vmatprep.subr.mxu0 0.0
        %196 = vmatpush1.msra.mxu0 0.0
        %197 = vmatprep.subr.mxu0 0.0
        %198 = vmatpush1.msra.mxu0 0.0
        %199 = vmatprep.subr.mxu0 0.0
        %200 = vmatpush1.msra.mxu0 0.0
        %201 = vmatprep.subr.mxu0 0.0
        %202 = vmatpush1.msra.mxu0 0.0
        %203 = vmatprep.subr.mxu0 0.0
        %204 = vmatpush1.msra.mxu0 0.0
        %205 = vmatprep.subr.mxu0 0.0
        %206 = vmatpush1.msra.mxu0 0.0
        %207 = vmatprep.subr.mxu0 0.0
        %208 = vmatpush1.msra.mxu0 0.0
        %209 = vmatprep.subr.mxu0 0.0
        %210 = vmatpush1.msra.mxu0 0.0
        %211 = vmatprep.subr.mxu0 0.0
        %212 = vmatpush1.msra.mxu0 0.0
        %213 = vmatprep.subr.mxu0 0.0
        %214 = vmatpush1.msra.mxu0 0.0
        %215 = vmatprep.subr.mxu0 0.0
        %216 = vmatpush1.msra.mxu0 0.0
        %217 = vmatprep.subr.mxu0 0.0
        %218 = vmatpush1.msra.mxu0 0.0
        %219 = vmatprep.subr.mxu0 0.0
        %220 = vmatpush1.msra.mxu0 0.0
        %221 = vmatprep.subr.mxu0 0.0
        %222 = vmatpush1.msra.mxu0 0.0
        %223 = vmatprep.subr.mxu0 0.0
        %224 = vmatpush1.msra.mxu0 0.0
        %225 = vmatprep.subr.mxu0 0.0
        %226 = vmatpush1.msra.mxu0 0.0
        %227 = vmatprep.subr.mxu0 0.0
        %228 = vmatpush1.msra.mxu0 0.0
        %229 = vmatprep.subr.mxu0 0.0
        %230 = vmatpush1.msra.mxu0 0.0
        %231 = vmatprep.subr.mxu0 0.0
        %232 = vmatpush1.msra.mxu0 0.0
        %233 = vmatprep.subr.mxu0 0.0
        %234 = vmatpush1.msra.mxu0 0.0
        %235 = vmatprep.subr.mxu0 0.0
        %236 = vmatpush1.msra.mxu0 0.0
        %237 = vmatprep.subr.mxu0 0.0
        %238 = vmatpush1.msra.mxu0 0.0
        %239 = vmatprep.subr.mxu0 0.0
        %240 = vmatpush1.msra.mxu0 0.0
        %241 = vmatprep.mubr.f32.mxu0 0.0
        %242 = vmatmul.mubr.f32.gmra.mrb[0].mxu0 %v171
        %v243 = vpop.f32.mrb[0].mxu0
        %v244 = vadd.f32 0.0, %v243
        %v245 = vpop.f32.mrb[0].mxu0
        %246 = vdwg.mxu0
        %v247 = vld [vmem:[%s2] sm:$0xff]
        %v248 = vld [vmem:[%s2 + $0x8] sm:$0xff]
        %vm249 = vcmask 64512
        %v251 = vsel %vm249, %v247, 0
        %v254 = vsel %vm249, %v248, 0
        %256 = vmatprep.subr.mxu0 0.0
        %257 = vmatpush1.msra.mxu0 %v244
        %258 = vmatprep.subr.mxu0 0.0
        %259 = vmatpush1.msra.mxu0 0.0
        %260 = vmatprep.subr.mxu0 0.0
        %261 = vmatpush1.msra.mxu0 0.0
        %262 = vmatprep.subr.mxu0 0.0
        %263 = vmatpush1.msra.mxu0 0.0
        %264 = vmatprep.subr.mxu0 0.0
        %265 = vmatpush1.msra.mxu0 0.0
        %266 = vmatprep.subr.mxu0 0.0
        %267 = vmatpush1.msra.mxu0 0.0
        %268 = vmatprep.subr.mxu0 0.0
        %269 = vmatpush1.msra.mxu0 0.0
        %270 = vmatprep.subr.mxu0 0.0
        %271 = vmatpush1.msra.mxu0 0.0
        %272 = vmatprep.subr.mxu0 0.0
        %273 = vmatpush1.msra.mxu0 0.0
        %274 = vmatprep.subr.mxu0 0.0
        %275 = vmatpush1.msra.mxu0 0.0
        %276 = vmatprep.subr.mxu0 0.0
        %277 = vmatpush1.msra.mxu0 0.0
        %278 = vmatprep.subr.mxu0 0.0
        %279 = vmatpush1.msra.mxu0 0.0
        %280 = vmatprep.subr.mxu0 0.0
        %281 = vmatpush1.msra.mxu0 0.0
        %282 = vmatprep.subr.mxu0 0.0
        %283 = vmatpush1.msra.mxu0 0.0
        %284 = vmatprep.subr.mxu0 0.0
        %285 = vmatpush1.msra.mxu0 0.0
        %286 = vmatprep.subr.mxu0 0.0
        %287 = vmatpush1.msra.mxu0 0.0
        %288 = vmatprep.subr.mxu0 0.0
        %289 = vmatpush1.msra.mxu0 0.0
        %290 = vmatprep.subr.mxu0 0.0
        %291 = vmatpush1.msra.mxu0 0.0
        %292 = vmatprep.subr.mxu0 0.0
        %293 = vmatpush1.msra.mxu0 0.0
        %294 = vmatprep.subr.mxu0 0.0
        %295 = vmatpush1.msra.mxu0 0.0
        %296 = vmatprep.subr.mxu0 0.0
        %297 = vmatpush1.msra.mxu0 0.0
        %298 = vmatprep.subr.mxu0 0.0
        %299 = vmatpush1.msra.mxu0 0.0
        %300 = vmatprep.subr.mxu0 0.0
        %301 = vmatpush1.msra.mxu0 0.0
        %302 = vmatprep.subr.mxu0 0.0
        %303 = vmatpush1.msra.mxu0 0.0
        %304 = vmatprep.subr.mxu0 0.0
        %305 = vmatpush1.msra.mxu0 0.0
        %306 = vmatprep.subr.mxu0 0.0
        %307 = vmatpush1.msra.mxu0 0.0
        %308 = vmatprep.subr.mxu0 0.0
        %309 = vmatpush1.msra.mxu0 0.0
        %310 = vmatprep.subr.mxu0 0.0
        %311 = vmatpush1.msra.mxu0 0.0
        %312 = vmatprep.subr.mxu0 0.0
        %313 = vmatpush1.msra.mxu0 0.0
        %314 = vmatprep.subr.mxu0 0.0
        %315 = vmatpush1.msra.mxu0 0.0
        %316 = vmatprep.subr.mxu0 0.0
        %317 = vmatpush1.msra.mxu0 0.0
        %318 = vmatprep.subr.mxu0 0.0
        %319 = vmatpush1.msra.mxu0 0.0
        %320 = vmatprep.mubr.f32.mxu0 0.0
        %321 = vmatmul.mubr.f32.gmra.mrb[0].mxu0 %v251
        %v322 = vpop.f32.mrb[0].mxu0
        %v323 = vadd.f32 0.0, %v322
        %v324 = vpop.f32.mrb[0].mxu0
        %325 = vmatprep.mubr.f32.mxu0 0.0
        %326 = vmatmul.mubr.f32.gmra.mrb[0].mxu0 %v254
        %v327 = vpop.f32.mrb[0].mxu0
        %v328 = vadd.f32 0.0, %v327
        %v329 = vpop.f32.mrb[0].mxu0
        %330 = vdwg.mxu0
        %vm331 = vcmask 130048
        %332 = vst.msk [vmem:[%s161] sm:$0xff] %vm331, %v323
        %333 = vst.msk [vmem:[%s161 + $0x8] sm:$0xff] %vm331, %v328
        %s334 = sand.u32 %s93, 1
        %s335 = scalar_lea.sflag [#allocation3], %s334
        %s336 = sand.u32 %s93, 1
        %s337 = smul.addr %s336, 16
        %s338 = scalar_lea.vmem [#allocation2], %s337
        // Predicated region
        $region33: #{simple_segmentation_forward.3} parent=31 // pred_check
          %p339 = pneg %p103
        $region34: #{simple_segmentation_forward.3} parent=31 // pred_check_branch
          %341 = sbr.rel (%p339) target = $region36
        $region35: #{simple_segmentation_forward.3} parent=31 // pred_region
          %s343 = ssub.s32 256, 256
          %344 = vsyncadd %s335, %s343
          %s345 = smul.addr %s17, 2
          %s346 = smul.addr %s345, 128
          %s347 = scalar_lea.hbm %s3, %s346
          %s348 = sshll.u32 %s338, 4
          %s349 = int_to_ptr.vmem [resolvable:$true] %s348
          %354 = dma.vmem_to_hbm [thread:$0]  %s349, 256, %s347, %s335, 128, 128, 8
        $region36: #{simple_segmentation_forward.3} parent=31 // pred_fallthru
          _
      $region32: #{simple_segmentation_forward.3} parent=5 // pred_fallthru
        _
      %p355 = scmp.le.s32.totalorder 2, %s12
      // Predicated region
      $region37: #{simple_segmentation_forward.3} parent=5 // pred_check
        %p356 = pneg %p355
      $region38: #{simple_segmentation_forward.3} parent=5 // pred_check_branch
        %358 = sbr.rel (%p356) target = $region40
      $region39: #{simple_segmentation_forward.3} parent=5 // pred_region
        %s359 = ssub.s32 %s12, 2
        // Predicated region
        $region41: #{simple_segmentation_forward.3} parent=39 // pred_check
          %p360 = pneg %p109
        $region42: #{simple_segmentation_forward.3} parent=39 // pred_check_branch
          %362 = sbr.rel (%p360) target = $region44
        $region43: #{simple_segmentation_forward.3} parent=39 // pred_region
          %s363 = sand.u32 %s94, 1
          %s364 = scalar_lea.sflag [#allocation3], %s363
          %s365 = sand.u32 %s94, 1
          %s366 = smul.addr %s365, 16
          %s367 = scalar_lea.vmem [#allocation2], %s366
          %368 = dma.done %s364, 256
        $region44: #{simple_segmentation_forward.3} parent=39 // pred_fallthru
          _
      $region40: #{simple_segmentation_forward.3} parent=5 // pred_fallthru
        _
    $region6: #{simple_segmentation_forward.3} parent=1 // loop_footer
      %s16 = sadd.s32 1, %s12
    $region7: #{simple_segmentation_forward.3} parent=1 // loop_footer_branch
      %11 = sbr.rel target = $region3
    $region8: #{simple_segmentation_forward.3} parent=1 // loop_exit
      _
    %369 = vsyncpa [#allocation3], 1
    %s370 = scalar_lea.sflag [#allocation3], 1
    %371 = vsyncpa %s370, 1

// kernel: simple_segmentation_forward.2
$region0: #{simple_segmentation_forward.2}
  #allocation0 [shape = 'u32[]', space=smem, size = 0x4, offset = 0x4, fixed_abs, tag = 'smem constant byte address 0x4 - core index']
  #allocation1 [shape = 'u32[144,128]{1,0:T(1,128)}', space=vmem, size = 0x12000, scoped, tag = 'internal scratch']
  #allocation2 [shape = 'f32[72,72]{1,0:T(8,128)}', space=vmem, size = 0x9000, scoped, tag = 'scratch operand']
  %s0 = inlined_call_operand.vmem [shape: bf16[2,4,8,128], index: 0, kind: input, shape index: {}]
  %s1 = inlined_call_operand.vmem [shape: bf16[8,72], index: 1, kind: input, shape index: {}]
  %s2 = inlined_call_operand.vmem [shape: f32[8,1], index: 2, kind: input, shape index: {}]
  %s3 = inlined_call_operand.vmem [shape: bf16[6,8], index: 3, kind: input, shape index: {}]
  %s4 = inlined_call_operand.vmem [shape: f32[6,1], index: 4, kind: input, shape index: {}]
  %s5 = inlined_call_operand.vmem [shape: f32[2,6,72], index: 5, kind: output, shape index: {}]
  %s6 = sld [smem:[#allocation0]]
  $region53: #{simple_segmentation_forward.2} parent=0
    _
  %s8 = ssub.s32 1, %s6
  %s9 = scalar_select 0, %s8, %s6
  loop: start=0, step=1, limit=4
  $region2: #{simple_segmentation_forward.2} parent=0 // loop_pre_header
    _
  $region3: #{simple_segmentation_forward.2} parent=0 // loop_header
    %s11 = sphi 0, %s15
    %p12 = scmp.ge.s32.totalorder %s11, 4
    %s21 = sphi 0, %s23
    %s24 = sphi 0, %s21
    %s25 = sphi 0, %s24
    %s41 = sphi 0, %s25
    %s45 = sphi 0, %s45
    %s47 = sphi 0, %s45
    %s48 = sphi 0, %s47
    %s62 = sphi 0, %s48
    %s66 = sphi 0, %s66
    %s68 = sphi 0, %s66
    %s69 = sphi 0, %s68
    %s83 = sphi 0, %s69
    %s87 = sphi 0, %s87
    %s89 = sphi 0, %s87
    %s90 = sphi 0, %s89
    %s104 = sphi 0, %s90
    %s108 = sphi 0, %s108
    %s110 = sphi 0, %s108
    %s111 = sphi 0, %s110
    %s125 = sphi 0, %s111
    %s131 = sphi 0, %s133
    %s134 = sphi 0, %s131
    %s135 = sphi 0, %s134
    %s151 = sphi 0, %s135
  $region4: #{simple_segmentation_forward.2} parent=0 // loop_header_branch
    %14 = sbr.rel (%p12) target = $region8
  $region5: #{simple_segmentation_forward.2} parent=0 // loop_body
    %s16 = ssub.s32 %s11, 1
    %s17 = ssub.s32 %s11, 2
    %s18 = sadd.s32 %s11, 1
    %s19 = ssub.s32 %s11, %s18
    %p20 = scmp.eq.s32.totalorder %s19, 0
    %s22 = sadd.s32 %s21, 1
    %s23 = scalar_select %p20, %s21, %s22
    %p26 = pneg %p20
    %p27 = scmp.eq.s32.totalorder %s11, 1
    %p28 = por %p26, %p27
    %p29 = scmp.ne.s32.totalorder %s21, %s24
    %p30 = scmp.eq.s32.totalorder %s11, 0
    %p31 = por %p29, %p30
    %p32 = scmp.ne.s32.totalorder %s21, %s24
    %p33 = scmp.eq.s32.totalorder %s16, 1
    %p34 = por %p32, %p33
    %p35 = scmp.ne.s32.totalorder %s24, %s25
    %p36 = scmp.eq.s32.totalorder %s16, 0
    %p37 = por %p35, %p36
    %p38 = scmp.ne.s32.totalorder %s24, %s25
    %p39 = scmp.eq.s32.totalorder %s17, 1
    %p40 = por %p38, %p39
    %p42 = scmp.ne.s32.totalorder %s25, %s41
    %p43 = scmp.eq.s32.totalorder %s17, 0
    %p44 = por %p42, %p43
    %s46 = sadd.s32 %s45, 1
    %p49 = scmp.eq.s32.totalorder %s11, 1
    %p50 = scmp.ne.s32.totalorder %s45, %s47
    %p51 = scmp.eq.s32.totalorder %s11, 0
    %p52 = por %p50, %p51
    %p53 = scmp.ne.s32.totalorder %s45, %s47
    %p54 = scmp.eq.s32.totalorder %s16, 1
    %p55 = por %p53, %p54
    %p56 = scmp.ne.s32.totalorder %s47, %s48
    %p57 = scmp.eq.s32.totalorder %s16, 0
    %p58 = por %p56, %p57
    %p59 = scmp.ne.s32.totalorder %s47, %s48
    %p60 = scmp.eq.s32.totalorder %s17, 1
    %p61 = por %p59, %p60
    %p63 = scmp.ne.s32.totalorder %s48, %s62
    %p64 = scmp.eq.s32.totalorder %s17, 0
    %p65 = por %p63, %p64
    %s67 = sadd.s32 %s66, 1
    %p70 = scmp.eq.s32.totalorder %s11, 1
    %p71 = scmp.ne.s32.totalorder %s66, %s68
    %p72 = scmp.eq.s32.totalorder %s11, 0
    %p73 = por %p71, %p72
    %p74 = scmp.ne.s32.totalorder %s66, %s68
    %p75 = scmp.eq.s32.totalorder %s16, 1
    %p76 = por %p74, %p75
    %p77 = scmp.ne.s32.totalorder %s68, %s69
    %p78 = scmp.eq.s32.totalorder %s16, 0
    %p79 = por %p77, %p78
    %p80 = scmp.ne.s32.totalorder %s68, %s69
    %p81 = scmp.eq.s32.totalorder %s17, 1
    %p82 = por %p80, %p81
    %p84 = scmp.ne.s32.totalorder %s69, %s83
    %p85 = scmp.eq.s32.totalorder %s17, 0
    %p86 = por %p84, %p85
    %s88 = sadd.s32 %s87, 1
    %p91 = scmp.eq.s32.totalorder %s11, 1
    %p92 = scmp.ne.s32.totalorder %s87, %s89
    %p93 = scmp.eq.s32.totalorder %s11, 0
    %p94 = por %p92, %p93
    %p95 = scmp.ne.s32.totalorder %s87, %s89
    %p96 = scmp.eq.s32.totalorder %s16, 1
    %p97 = por %p95, %p96
    %p98 = scmp.ne.s32.totalorder %s89, %s90
    %p99 = scmp.eq.s32.totalorder %s16, 0
    %p100 = por %p98, %p99
    %p101 = scmp.ne.s32.totalorder %s89, %s90
    %p102 = scmp.eq.s32.totalorder %s17, 1
    %p103 = por %p101, %p102
    %p105 = scmp.ne.s32.totalorder %s90, %s104
    %p106 = scmp.eq.s32.totalorder %s17, 0
    %p107 = por %p105, %p106
    %s109 = sadd.s32 %s108, 1
    %p112 = scmp.eq.s32.totalorder %s11, 1
    %p113 = scmp.ne.s32.totalorder %s108, %s110
    %p114 = scmp.eq.s32.totalorder %s11, 0
    %p115 = por %p113, %p114
    %p116 = scmp.ne.s32.totalorder %s108, %s110
    %p117 = scmp.eq.s32.totalorder %s16, 1
    %p118 = por %p116, %p117
    %p119 = scmp.ne.s32.totalorder %s110, %s111
    %p120 = scmp.eq.s32.totalorder %s16, 0
    %p121 = por %p119, %p120
    %p122 = scmp.ne.s32.totalorder %s110, %s111
    %p123 = scmp.eq.s32.totalorder %s17, 1
    %p124 = por %p122, %p123
    %p126 = scmp.ne.s32.totalorder %s111, %s125
    %p127 = scmp.eq.s32.totalorder %s17, 0
    %p128 = por %p126, %p127
    %s129 = ssub.s32 %s11, %s18
    %p130 = scmp.eq.s32.totalorder %s129, 0
    %s132 = sadd.s32 %s131, 1
    %s133 = scalar_select %p130, %s131, %s132
    %p136 = pneg %p130
    %p137 = scmp.eq.s32.totalorder %s11, 1
    %p138 = por %p136, %p137
    %p139 = scmp.ne.s32.totalorder %s131, %s134
    %p140 = scmp.eq.s32.totalorder %s11, 0
    %p141 = por %p139, %p140
    %p142 = scmp.ne.s32.totalorder %s131, %s134
    %p143 = scmp.eq.s32.totalorder %s16, 1
    %p144 = por %p142, %p143
    %p145 = scmp.ne.s32.totalorder %s134, %s135
    %p146 = scmp.eq.s32.totalorder %s16, 0
    %p147 = por %p145, %p146
    %p148 = scmp.ne.s32.totalorder %s134, %s135
    %p149 = scmp.eq.s32.totalorder %s17, 1
    %p150 = por %p148, %p149
    %p152 = scmp.ne.s32.totalorder %s135, %s151
    %p153 = scmp.eq.s32.totalorder %s17, 0
    %p154 = por %p152, %p153
    %p155 = scmp.le.s32.totalorder 1, %s11
    %p156 = scmp.lt.s32.totalorder %s11, 3
    %p157 = pnand %p155, %p156
    %p158 = pneg %p157
    // Predicated region
    $region9: #{simple_segmentation_forward.2} parent=5 // pred_check
      _
    $region10: #{simple_segmentation_forward.2} parent=5 // pred_check_branch
      %160 = sbr.rel (%p157) target = $region12
    $region11: #{simple_segmentation_forward.2} parent=5 // pred_region
      %s161 = ssub.s32 %s11, 1
      // Predicated region
      $region13: #{simple_segmentation_forward.2} parent=11 // pred_check
        %p162 = pneg %p58
      $region14: #{simple_segmentation_forward.2} parent=11 // pred_check_branch
        %164 = sbr.rel (%p162) target = $region16
      $region15: #{simple_segmentation_forward.2} parent=11 // pred_region
        _
      $region16: #{simple_segmentation_forward.2} parent=11 // pred_fallthru
        _
      // Predicated region
      $region17: #{simple_segmentation_forward.2} parent=11 // pred_check
        %p165 = pneg %p79
      $region18: #{simple_segmentation_forward.2} parent=11 // pred_check_branch
        %167 = sbr.rel (%p165) target = $region20
      $region19: #{simple_segmentation_forward.2} parent=11 // pred_region
        _
      $region20: #{simple_segmentation_forward.2} parent=11 // pred_fallthru
        _
      // Predicated region
      $region21: #{simple_segmentation_forward.2} parent=11 // pred_check
        %p168 = pneg %p100
      $region22: #{simple_segmentation_forward.2} parent=11 // pred_check_branch
        %170 = sbr.rel (%p168) target = $region24
      $region23: #{simple_segmentation_forward.2} parent=11 // pred_region
        _
      $region24: #{simple_segmentation_forward.2} parent=11 // pred_fallthru
        _
      // Predicated region
      $region25: #{simple_segmentation_forward.2} parent=11 // pred_check
        %p171 = pneg %p121
      $region26: #{simple_segmentation_forward.2} parent=11 // pred_check_branch
        %173 = sbr.rel (%p171) target = $region28
      $region27: #{simple_segmentation_forward.2} parent=11 // pred_region
        _
      $region28: #{simple_segmentation_forward.2} parent=11 // pred_fallthru
        _
    $region12: #{simple_segmentation_forward.2} parent=5 // pred_fallthru
      _
    %p174 = scmp.lt.s32.totalorder %s11, 2
    // Predicated region
    $region29: #{simple_segmentation_forward.2} parent=5 // pred_check
      %p175 = pneg %p174
    $region30: #{simple_segmentation_forward.2} parent=5 // pred_check_branch
      %177 = sbr.rel (%p175) target = $region32
    $region31: #{simple_segmentation_forward.2} parent=5 // pred_region
      // Predicated region
      $region33: #{simple_segmentation_forward.2} parent=31 // pred_check
        %p178 = pneg %p31
      $region34: #{simple_segmentation_forward.2} parent=31 // pred_check_branch
        %180 = sbr.rel (%p178) target = $region36
      $region35: #{simple_segmentation_forward.2} parent=31 // pred_region
        %p181 = scmp.lt.s32.totalorder %s11, 1
        %s182 = scalar_select %p181, %s11, 1
        %s183 = smul.addr %s182, 4
        %s184 = smul.addr %s183, 4
        %s185 = scalar_lea.vmem %s0, %s184
      $region36: #{simple_segmentation_forward.2} parent=31 // pred_fallthru
        _
    $region32: #{simple_segmentation_forward.2} parent=5 // pred_fallthru
      _
    %p186 = scmp.le.s32.totalorder 1, %s11
    %p187 = scmp.lt.s32.totalorder %s11, 3
    %p188 = pnand %p186, %p187
    %p189 = pneg %p188
    // Predicated region
    $region37: #{simple_segmentation_forward.2} parent=5 // pred_check
      _
    $region38: #{simple_segmentation_forward.2} parent=5 // pred_check_branch
      %191 = sbr.rel (%p188) target = $region40
    $region39: #{simple_segmentation_forward.2} parent=5 // pred_region
      %s192 = ssub.s32 %s11, 1
      %p193 = scmp.lt.s32.totalorder %s16, 1
      %s194 = scalar_select %p193, %s16, 1
      %s195 = smul.addr %s194, 4
      %s196 = smul.addr %s195, 4
      %s197 = scalar_lea.vmem %s0, %s196
      %p198 = pneg %p37
      %p199 = pneg %p34
      %p200 = pneg %p58
      %p201 = pneg %p55
      %p202 = pneg %p79
      %p203 = pneg %p76
      %p204 = pneg %p100
      %p205 = pneg %p97
      %p206 = pneg %p121
      %p207 = pneg %p118
      %p208 = pneg %p147
      %p209 = pneg %p144
      %p210 = scmp.lt.s32.totalorder %s16, 1
      %s211 = scalar_select %p210, %s16, 1
      %s212 = smul.addr %s211, 8
      %s213 = scalar_lea.vmem %s5, %s212
      %p214 = scmp.lt.s32.totalorder %s16, 1
      %s215 = scalar_select %p214, %s16, 1
      %s216 = smul.addr %s215, 4
      %s217 = smul.addr %s216, 4
      %s218 = scalar_lea.vmem %s0, %s217
      %p219 = scmp.lt.s32.totalorder %s16, 1
      %s220 = scalar_select %p219, %s16, 1
      %s221 = smul.addr %s220, 8
      %s222 = scalar_lea.vmem %s5, %s221
      %v224 = vld [vmem:[%s218] sm:$0xf]
      %v225 = vunpack.c.l.bf16 %v224
      %s226 = scalar_lea.vmem %s218, 4
      %v227 = vld [vmem:[%s226] sm:$0xf]
      %v228 = vunpack.c.l.bf16 %v227
      %s229 = scalar_lea.vmem %s218, 8
      %v230 = vld [vmem:[%s229] sm:$0xf]
      %v231 = vunpack.c.l.bf16 %v230
      %s232 = scalar_lea.vmem %s218, 12
      %v233 = vld [vmem:[%s232] sm:$0xf]
      %v234 = vunpack.c.l.bf16 %v233
      %vm235 = vcmask 588800
      %236 = vst.msk [vmem:[#allocation2] sm:$0xff] %vm235, %v225
      %237 = vst.msk [vmem:[#allocation2 + $0x8] sm:$0xff] %vm235, %v228
      %239 = vrot.lane.b32.xlu0 %v225, 127
      %v240 = vpop.permute.xlu0 %239
      %242 = vst.msk [vmem:[#allocation2 + $0x10] sm:$0xff] %vm235, %v240
      %243 = vst.msk [vmem:[#allocation2 + $0x18] sm:$0xff] %vm235, %v231
      %244 = vst.msk [vmem:[#allocation2 + $0x20] sm:$0xff] %vm235, %v234
      %246 = vrot.lane.b32.xlu0 %v231, 127
      %v247 = vpop.permute.xlu0 %246
      %249 = vst.msk [vmem:[#allocation2 + $0x28] sm:$0xff] %vm235, %v247
      %250 = vrot.lane.b32.xlu0 %v225, 119
      %v251 = vpop.permute.xlu0 %250
      %253 = vst.msk [vmem:[#allocation2 + $0x30] sm:$0xff] %vm235, %v251
      %255 = vrot.lane.b32.xlu0 %v228, 119
      %v256 = vpop.permute.xlu0 %255
      %258 = vst.msk [vmem:[#allocation2 + $0x38] sm:$0xff] %vm235, %v256
      %259 = vrot.lane.b32.xlu0 %v225, 118
      %v260 = vpop.permute.xlu0 %259
      %262 = vst.msk [vmem:[#allocation2 + $0x40] sm:$0xff] %vm235, %v260
      %v263 = vld [vmem:[#allocation2] sm:$0xff]
      %v264 = vld [vmem:[#allocation2 + $0x8] sm:$0xff]
      %v265 = vld [vmem:[#allocation2 + $0x10] sm:$0xff]
      %v266 = vld [vmem:[#allocation2 + $0x18] sm:$0xff]
      %v267 = vld [vmem:[#allocation2 + $0x20] sm:$0xff]
      %v268 = vld [vmem:[#allocation2 + $0x28] sm:$0xff]
      %v269 = vld [vmem:[#allocation2 + $0x30] sm:$0xff]
      %v270 = vld [vmem:[#allocation2 + $0x38] sm:$0xff]
      %v271 = vld [vmem:[#allocation2 + $0x40] sm:$0xff]
      %v272 = vpack.c.bf16 %v264, %v263
      %v273 = vpack.c.bf16 %v266, %v265
      %v274 = vpack.c.bf16 %v268, %v267
      %v275 = vpack.c.bf16 %v270, %v269
      %v276 = vpack.c.bf16 %v271, %v271
      %v277 = vld [vmem:[%s1] sm:$0xf]
      %v278 = vld [vmem:[%s2] sm:$0xff]
      %280 = vset.pattern.permute.xlu0 0
      %281 = vperm.xlu0 %280, %v278
      %v282 = vpop.permute.xlu0 %281
      %v285 = vsel %vm235, %v277, 0
      %vm287 = vcmask 1043456
      %v289 = vsel %vm287, %v276, 0
      %291 = vmatprep.subr.bf16.mxu0 0
      %292 = vmatpush1.bf16.msra.mxu0 %v272
      %293 = vmatprep.subr.bf16.mxu0 0
      %294 = vmatpush1.bf16.msra.mxu0 %v273
      %295 = vmatprep.subr.bf16.mxu0 0
      %296 = vmatpush1.bf16.msra.mxu0 %v274
      %297 = vmatprep.subr.bf16.mxu0 0
      %298 = vmatpush1.bf16.msra.mxu0 %v275
      %299 = vmatprep.subr.bf16.mxu0 0
      %300 = vmatpush1.bf16.msra.mxu0 %v289
      %301 = vmatprep.subr.bf16.mxu0 0
      %302 = vmatpush1.bf16.msra.mxu0 0
      %303 = vmatprep.subr.bf16.mxu0 0
      %304 = vmatpush1.bf16.msra.mxu0 0
      %305 = vmatprep.subr.bf16.mxu0 0
      %306 = vmatpush1.bf16.msra.mxu0 0
      %307 = vmatprep.subr.bf16.mxu0 0
      %308 = vmatpush1.bf16.msra.mxu0 0
      %309 = vmatprep.subr.bf16.mxu0 0
      %310 = vmatpush1.bf16.msra.mxu0 0
      %311 = vmatprep.subr.bf16.mxu0 0
      %312 = vmatpush1.bf16.msra.mxu0 0
      %313 = vmatprep.subr.bf16.mxu0 0
      %314 = vmatpush1.bf16.msra.mxu0 0
      %315 = vmatprep.subr.bf16.mxu0 0
      %316 = vmatpush1.bf16.msra.mxu0 0
      %317 = vmatprep.subr.bf16.mxu0 0
      %318 = vmatpush1.bf16.msra.mxu0 0
      %319 = vmatprep.subr.bf16.mxu0 0
      %320 = vmatpush1.bf16.msra.mxu0 0
      %321 = vmatprep.subr.bf16.mxu0 0
      %322 = vmatpush1.bf16.msra.mxu0 0
      %323 = vmatprep.mubr.bf16.mxu0 0
      %324 = vmatmul.mubr.bf16.gmra.mrb[0].mxu0 %v285
      %v325 = vpop.f32.mrb[0].mxu0
      %v326 = vadd.f32 %v282, %v325
      %v327 = vpop.f32.mrb[0].mxu0
      %v328 = vpop.f32.mrb[0].mxu0
      %v329 = vpop.f32.mrb[0].mxu0
      %330 = vdwg.mxu0
      %v331 = vmax.f32 %v326, 0.0
      %v332 = vld [vmem:[%s3] sm:$0x7]
      %v333 = vpack.c.bf16 %v331, %v331
      %v334 = vld [vmem:[%s4] sm:$0x3f]
      %336 = vset.pattern.permute.xlu0 0
      %337 = vperm.xlu0 %336, %v334
      %v338 = vpop.permute.xlu0 %337
      %vm340 = vcmask 64512
      %v342 = vsel %vm340, %v332, 0
      %v345 = vsel %vm287, %v333, 0
      %347 = vmatprep.subr.bf16.mxu0 0
      %348 = vmatpush1.bf16.msra.mxu0 %v345
      %349 = vmatprep.subr.bf16.mxu0 0
      %350 = vmatpush1.bf16.msra.mxu0 0
      %351 = vmatprep.subr.bf16.mxu0 0
      %352 = vmatpush1.bf16.msra.mxu0 0
      %353 = vmatprep.subr.bf16.mxu0 0
      %354 = vmatpush1.bf16.msra.mxu0 0
      %355 = vmatprep.subr.bf16.mxu0 0
      %356 = vmatpush1.bf16.msra.mxu0 0
      %357 = vmatprep.subr.bf16.mxu0 0
      %358 = vmatpush1.bf16.msra.mxu0 0
      %359 = vmatprep.subr.bf16.mxu0 0
      %360 = vmatpush1.bf16.msra.mxu0 0
      %361 = vmatprep.subr.bf16.mxu0 0
      %362 = vmatpush1.bf16.msra.mxu0 0
      %363 = vmatprep.subr.bf16.mxu0 0
      %364 = vmatpush1.bf16.msra.mxu0 0
      %365 = vmatprep.subr.bf16.mxu0 0
      %366 = vmatpush1.bf16.msra.mxu0 0
      %367 = vmatprep.subr.bf16.mxu0 0
      %368 = vmatpush1.bf16.msra.mxu0 0
      %369 = vmatprep.subr.bf16.mxu0 0
      %370 = vmatpush1.bf16.msra.mxu0 0
      %371 = vmatprep.subr.bf16.mxu0 0
      %372 = vmatpush1.bf16.msra.mxu0 0
      %373 = vmatprep.subr.bf16.mxu0 0
      %374 = vmatpush1.bf16.msra.mxu0 0
      %375 = vmatprep.subr.bf16.mxu0 0
      %376 = vmatpush1.bf16.msra.mxu0 0
      %377 = vmatprep.subr.bf16.mxu0 0
      %378 = vmatpush1.bf16.msra.mxu0 0
      %379 = vmatprep.mubr.bf16.mxu0 0
      %380 = vmatmul.mubr.bf16.gmra.mrb[0].mxu0 %v342
      %v381 = vpop.f32.mrb[0].mxu0
      %v382 = vadd.f32 %v338, %v381
      %v383 = vpop.f32.mrb[0].mxu0
      %v384 = vpop.f32.mrb[0].mxu0
      %v385 = vpop.f32.mrb[0].mxu0
      %386 = vdwg.mxu0
      %vm387 = vcmask 586752
      %388 = vst.msk [vmem:[%s222] sm:$0x3f] %vm387, %v382
      %p389 = scmp.lt.s32.totalorder %s16, 1
      %s390 = scalar_select %p389, %s16, 1
      %s391 = smul.addr %s390, 8
      %s392 = scalar_lea.vmem %s5, %s391
      // Predicated region
      $region41: #{simple_segmentation_forward.2} parent=39 // pred_check
        %p393 = pneg %p144
      $region42: #{simple_segmentation_forward.2} parent=39 // pred_check_branch
        %395 = sbr.rel (%p393) target = $region44
      $region43: #{simple_segmentation_forward.2} parent=39 // pred_region
        _
      $region44: #{simple_segmentation_forward.2} parent=39 // pred_fallthru
        _
    $region40: #{simple_segmentation_forward.2} parent=5 // pred_fallthru
      _
    %p396 = scmp.le.s32.totalorder 2, %s11
    // Predicated region
    $region45: #{simple_segmentation_forward.2} parent=5 // pred_check
      %p397 = pneg %p396
    $region46: #{simple_segmentation_forward.2} parent=5 // pred_check_branch
      %399 = sbr.rel (%p397) target = $region48
    $region47: #{simple_segmentation_forward.2} parent=5 // pred_region
      %s400 = ssub.s32 %s11, 2
      // Predicated region
      $region49: #{simple_segmentation_forward.2} parent=47 // pred_check
        %p401 = pneg %p150
      $region50: #{simple_segmentation_forward.2} parent=47 // pred_check_branch
        %403 = sbr.rel (%p401) target = $region52
      $region51: #{simple_segmentation_forward.2} parent=47 // pred_region
        %p404 = scmp.lt.s32.totalorder %s17, 1
        %s405 = scalar_select %p404, %s17, 1
        %s406 = smul.addr %s405, 8
        %s407 = scalar_lea.vmem %s5, %s406
      $region52: #{simple_segmentation_forward.2} parent=47 // pred_fallthru
        _
    $region48: #{simple_segmentation_forward.2} parent=5 // pred_fallthru
      _
  $region6: #{simple_segmentation_forward.2} parent=0 // loop_footer
    %s15 = sadd.s32 1, %s11
  $region7: #{simple_segmentation_forward.2} parent=0 // loop_footer_branch
    %10 = sbr.rel target = $region3
  $region8: #{simple_segmentation_forward.2} parent=0 // loop_exit
    _

</llo_original>
